<compile_context>
chip_gen: v7x
topology: tpu7x:2x2x1
jax: 0.10.0
libtpu: 0.0.40
codegen_flags: <defaults>
</compile_context>

<pallas_src>
import functools

import jax
import jax.numpy as jnp
from jax.experimental import pallas as pl
from jax.experimental.pallas import tpu as pltpu


def _round_up(n: int, m: int) -> int:
    return ((n + m - 1) // m) * m


def fused_linear_kernel(x_ref, w_ref, b_ref, out_ref):
    # Single fused matmul: y = x @ W_fused + b_fused.
    # x / W are bf16, accumulation is f32 on the MXU, bias add + store in f32.
    y = jnp.dot(x_ref[...], w_ref[...], preferred_element_type=jnp.float32)
    out_ref[...] = (y + b_ref[...]).astype(out_ref.dtype)


def prepare_params(w1, b1, w2, b2, *, d_pad, o_pad, compute_dtype=jnp.bfloat16):
    """One-time parameter prep (hoisted out of the per-call forward path).

    Collapses Linear(D->H) . Linear(H->O) into one [D, O] weight and [O] bias
    (exact up to fp rounding because there is no nonlinearity in between),
    zero-pads the feature dims to lane-aligned sizes, and casts the weight to
    the bf16 compute dtype (bias stays f32 for the f32 epilogue).

    Args use the PyTorch nn.Linear layout: w1 [H, D], b1 [H], w2 [O, H], b2 [O].
    """
    w1f = w1.astype(jnp.float32)
    w2f = w2.astype(jnp.float32)
    w_fused = w1f.T @ w2f.T                                   # [D, O]
    b_fused = b1.astype(jnp.float32) @ w2f.T + b2.astype(jnp.float32)  # [O]

    D, O = w_fused.shape
    w_fused = jnp.pad(w_fused, ((0, d_pad - D), (0, o_pad - O)))
    b_fused = jnp.pad(b_fused, ((0, o_pad - O),))
    return w_fused.astype(compute_dtype), b_fused.reshape(1, o_pad)


@functools.partial(jax.jit, static_argnums=(3,))
def fashion_mnist_model_v0_forward(x_nchw, w_fused_pad, b_fused_pad, num_outputs):
    """Forward pass equivalent to FashinMNISTModelV0 (with fused params).

    Args:
      x_nchw:       [B, C, H, W] float32 input (PyTorch NCHW convention).
      w_fused_pad:  [D_pad, O_pad] bf16 fused weight from prepare_params.
      b_fused_pad:  [1, O_pad] f32 fused bias from prepare_params.
      num_outputs:  true (unpadded) number of output logits.
    Returns:
      [B, num_outputs] float32 logits.
    """
    B = x_nchw.shape[0]
    x_flat = x_nchw.reshape(B, -1)            # nn.Flatten(): row-major, keep batch
    D = x_flat.shape[1]
    D_pad, O_pad = w_fused_pad.shape

    # Batch tile: big enough to amortize the ~0.35 us per-grid-step overhead,
    # small enough that double-buffered x/out blocks fit easily in VMEM on all
    # of v5e / v6e / v7x.  Multiple of 16 for bf16 sublane packing.
    TB = min(512, _round_up(B, 16))
    B_pad = _round_up(B, TB)

    # Zero-pad batch rows and feature columns; cast activations to bf16.
    x_pad = jnp.zeros((B_pad, D_pad), jnp.bfloat16)
    x_pad = x_pad.at[:B, :D].set(x_flat.astype(jnp.bfloat16))

    grid = (B_pad // TB,)

    cost = pl.CostEstimate(
        flops=2 * B_pad * D_pad * O_pad,
        transcendentals=0,
        bytes_accessed=(B_pad * D_pad * 2        # x (bf16)
                        + D_pad * O_pad * 2      # fused W (bf16)
                        + O_pad * 4              # fused b (f32)
                        + B_pad * O_pad * 4),    # out (f32)
    )

    out = pl.pallas_call(
        fused_linear_kernel,
        out_shape=jax.ShapeDtypeStruct((B_pad, O_pad), jnp.float32),
        grid=grid,
        in_specs=[
            pl.BlockSpec((TB, D_pad), lambda i: (i, 0)),     # batch-tiled x
            pl.BlockSpec((D_pad, O_pad), lambda i: (0, 0)),  # VMEM-resident W
            pl.BlockSpec((1, O_pad), lambda i: (0, 0)),      # VMEM-resident b
        ],
        out_specs=pl.BlockSpec((TB, O_pad), lambda i: (i, 0)),
        compiler_params=pltpu.CompilerParams(
            dimension_semantics=("parallel",)),              # v7x: 2 TCs share batch
        cost_estimate=cost,
    )(x_pad, w_fused_pad, b_fused_pad)

    # Strip batch padding and the lane padding of the output features.
    return out[:B, :num_outputs]


if __name__ == "__main__":
    # Small shapes consistent with the module: batch=2, 1x16x16 "image"
    # (input_shape = 256), hidden_units=32, output_shape=10.
    B, C, H, W = 2, 1, 16, 16
    input_shape = C * H * W
    hidden_units = 32
    output_shape = 10

    key = jax.random.PRNGKey(0)
    kx, k1, k2, k3, k4 = jax.random.split(key, 5)

    x = jax.random.normal(kx, (B, C, H, W), dtype=jnp.float32)

    # Deterministic parameter init (uniform +-1/sqrt(fan_in), like nn.Linear).
    bound1 = 1.0 / (input_shape ** 0.5)
    w1 = jax.random.uniform(k1, (hidden_units, input_shape), jnp.float32,
                            -bound1, bound1)
    b1 = jax.random.uniform(k2, (hidden_units,), jnp.float32, -bound1, bound1)
    bound2 = 1.0 / (hidden_units ** 0.5)
    w2 = jax.random.uniform(k3, (output_shape, hidden_units), jnp.float32,
                            -bound2, bound2)
    b2 = jax.random.uniform(k4, (output_shape,), jnp.float32, -bound2, bound2)

    # One-time parameter prep (fusion + padding + bf16 cast), then forward.
    d_pad = _round_up(input_shape, 128)    # 256
    o_pad = _round_up(output_shape, 128)   # 128 -> lane-dense output stores
    w_fused, b_fused = prepare_params(w1, b1, w2, b2, d_pad=d_pad, o_pad=o_pad)

    out = fashion_mnist_model_v0_forward(x, w_fused, b_fused, output_shape)
    out = jax.block_until_ready(out)

    # Sanity-check against a plain-JAX f32 reference of the original
    # (un-collapsed) math. bf16 inputs/weights + the layer collapse change
    # results at the fp-rounding level, so the tolerance is loosened.
    ref = (x.reshape(B, -1) @ w1.T + b1) @ w2.T + b2
    assert out.shape == (B, output_shape)
    assert jnp.allclose(out, ref, atol=5e-2, rtol=5e-2), (
        "max abs err = %f" % float(jnp.max(jnp.abs(out - ref))))

    print("KERNEL_OK")
</pallas_src>

<mosaic_0001>
module attributes {stable_mosaic.version = 11 : i64} {
  func.func @fused_linear_kernel(%arg0: i32, %arg1: memref<16x256xbf16, #tpu.memory_space<vmem>>, %arg2: memref<256x128xbf16, #tpu.memory_space<vmem>>, %arg3: memref<1x128xf32, #tpu.memory_space<vmem>>, %arg4: memref<16x128xf32, #tpu.memory_space<vmem>>) attributes {dimension_semantics = [#tpu.dimension_semantics<parallel>], iteration_bounds = array<i64: 1>, scalar_prefetch = 0 : i64, scratch_operands = 0 : i64, tpu.core_type = #tpu.core_type<tc>, window_params = [{transform_indices = @transform_0, window_bounds = array<i64: 16, 256>}, {pipeline_mode = #tpu.pipeline_mode<synchronous>, transform_indices = @transform_1, window_bounds = array<i64: 256, 128>}, {pipeline_mode = #tpu.pipeline_mode<synchronous>, transform_indices = @transform_2, window_bounds = array<i64: 1, 128>}, {transform_indices = @transform_3, window_bounds = array<i64: 16, 128>}]} {
    %c0 = arith.constant 0 : index
    %c0_0 = arith.constant 0 : index
    %0 = vector.load %arg1[%c0, %c0_0] : memref<16x256xbf16, #tpu.memory_space<vmem>>, vector<16x256xbf16>
    %c0_1 = arith.constant 0 : index
    %c0_2 = arith.constant 0 : index
    %1 = vector.load %arg2[%c0_1, %c0_2] : memref<256x128xbf16, #tpu.memory_space<vmem>>, vector<256x128xbf16>
    %cst = arith.constant dense<0.000000e+00> : vector<16x128xf32>
    %2 = tpu.matmul %0, %1, %cst {dimension_numbers = #tpu.dot_dimension_numbers<[1], [0], [0], [1], [0, 0, 1, 1], [], []>} : vector<16x256xbf16>, vector<256x128xbf16>, vector<16x128xf32> -> vector<16x128xf32>
    %c0_3 = arith.constant 0 : index
    %c0_4 = arith.constant 0 : index
    %3 = vector.load %arg3[%c0_3, %c0_4] : memref<1x128xf32, #tpu.memory_space<vmem>>, vector<1x128xf32>
    %4 = vector.broadcast %3 : vector<1x128xf32> to vector<16x128xf32>
    %5 = arith.addf %2, %4 : vector<16x128xf32>
    %c0_5 = arith.constant 0 : index
    %c0_6 = arith.constant 0 : index
    %6 = vector.load %arg4[%c0_5, %c0_6] : memref<16x128xf32, #tpu.memory_space<vmem>>, vector<16x128xf32>
    tpu.vector_store %arg4[%c0_5, %c0_6], %5 {strides = array<i32>} : memref<16x128xf32, #tpu.memory_space<vmem>>, vector<16x128xf32>,
    return
  }
  func.func @transform_0(%arg0: i32) -> (i32, i32) {
    %c0_i32 = arith.constant 0 : i32
    %c0_i32_0 = arith.constant 0 : i32
    return %arg0, %c0_i32 : i32, i32
  }
  func.func @transform_1(%arg0: i32) -> (i32, i32) {
    %c0_i32 = arith.constant 0 : i32
    %c0_i32_0 = arith.constant 0 : i32
    %c0_i32_1 = arith.constant 0 : i32
    return %c0_i32, %c0_i32_0 : i32, i32
  }
  func.func @transform_2(%arg0: i32) -> (i32, i32) {
    %c0_i32 = arith.constant 0 : i32
    %c0_i32_0 = arith.constant 0 : i32
    %c0_i32_1 = arith.constant 0 : i32
    return %c0_i32, %c0_i32_0 : i32, i32
  }
  func.func @transform_3(%arg0: i32) -> (i32, i32) {
    %c0_i32 = arith.constant 0 : i32
    %c0_i32_0 = arith.constant 0 : i32
    return %arg0, %c0_i32 : i32, i32
  }
}

</mosaic_0001>

<llo_original>
// kernel: fashion_mnist_model_v0_forward.1
$region0: #{fashion_mnist_model_v0_forward.1}
  #allocation0 [shape = 'u32[]', space=smem, size = 0x4, offset = 0x4, fixed_abs, tag = 'smem constant byte address 0x4 - core index']
  #allocation1 [shape = 'u32[144,128]{1,0:T(1,128)}', space=vmem, size = 0x12000, scoped, tag = 'internal scratch']
  %s0 = inlined_call_operand.vmem [shape: bf16[16,256], index: 0, kind: input, shape index: {}]
  %s1 = inlined_call_operand.hbm [shape: bf16[256,128], index: 1, kind: input, shape index: {}]
  %s2 = inlined_call_operand.vmem [shape: f32[1,128], index: 2, kind: input, shape index: {}]
  %s3 = inlined_call_operand.vmem [shape: f32[16,128], index: 3, kind: output, shape index: {}]
  %s4 = sld [smem:[#allocation0]]
  $region26: #{fashion_mnist_model_v0_forward.1} parent=0
    _
  %s6 = ssub.s32 1, %s4
  %s7 = scalar_select 0, %s6, %s4
  $region1: #{fashion_mnist_model_v0_forward.1} parent=0
    #allocation2 [shape = 'u8[65536]{0}', space=vmem, size = 0x10000, scoped, tag = 'input window, operand 1, single buffered']
    #allocation3 [shape = 's32[1]{0}', space=sflag, size = 0x4, scoped, tag = 'scoped memory for fashion_mnist_model_v0_forward.1']
    %8 = vsyncpa [#allocation3], 0
    // Predicated region
    $region2: #{fashion_mnist_model_v0_forward.1} parent=1 // pred_check
      _
    $region3: #{fashion_mnist_model_v0_forward.1} parent=1 // pred_check_branch
      %10 = sbr.rel (0) target = $region5
    $region4: #{fashion_mnist_model_v0_forward.1} parent=1 // pred_region
      _
    $region5: #{fashion_mnist_model_v0_forward.1} parent=1 // pred_fallthru
      _
    // Predicated region
    $region6: #{fashion_mnist_model_v0_forward.1} parent=1 // pred_check
      _
    $region7: #{fashion_mnist_model_v0_forward.1} parent=1 // pred_check_branch
      %12 = sbr.rel (0) target = $region9
    $region8: #{fashion_mnist_model_v0_forward.1} parent=1 // pred_region
      %s14 = ssub.s32 2048, 2048
      %15 = vsyncadd [#allocation3], %s14
      %s16 = sshll.u32 [#allocation2], 4
      %s17 = int_to_ptr.vmem [resolvable:$true] %s16
      %22 = dma.hbm_to_vmem [thread:$0]  %s1, 2048, %s17, [#allocation3], 64, 64, 4
    $region9: #{fashion_mnist_model_v0_forward.1} parent=1 // pred_fallthru
      _
    // Predicated region
    $region10: #{fashion_mnist_model_v0_forward.1} parent=1 // pred_check
      _
    $region11: #{fashion_mnist_model_v0_forward.1} parent=1 // pred_check_branch
      %24 = sbr.rel (0) target = $region13
    $region12: #{fashion_mnist_model_v0_forward.1} parent=1 // pred_region
      _
    $region13: #{fashion_mnist_model_v0_forward.1} parent=1 // pred_fallthru
      _
    // Predicated region
    $region14: #{fashion_mnist_model_v0_forward.1} parent=1 // pred_check
      _
    $region15: #{fashion_mnist_model_v0_forward.1} parent=1 // pred_check_branch
      %26 = sbr.rel (0) target = $region17
    $region16: #{fashion_mnist_model_v0_forward.1} parent=1 // pred_region
      %27 = dma.done [#allocation3], 2048
    $region17: #{fashion_mnist_model_v0_forward.1} parent=1 // pred_fallthru
      _
    %v29 = vld [vmem:[%s0] sm:$0xff]
    %v30 = vld [vmem:[%s0 + $0x8] sm:$0xff]
    %v31 = vld [vmem:[#allocation2] sm:$0xf]
    %v32 = vld [vmem:[#allocation2 + $0x4] sm:$0xf]
    %v33 = vld [vmem:[#allocation2 + $0x8] sm:$0xf]
    %v34 = vld [vmem:[#allocation2 + $0xc] sm:$0xf]
    %v35 = vld [vmem:[#allocation2 + $0x10] sm:$0xf]
    %v36 = vld [vmem:[#allocation2 + $0x14] sm:$0xf]
    %v37 = vld [vmem:[#allocation2 + $0x18] sm:$0xf]
    %v38 = vld [vmem:[#allocation2 + $0x1c] sm:$0xf]
    %v39 = vld [vmem:[#allocation2 + $0x20] sm:$0xf]
    %v40 = vld [vmem:[#allocation2 + $0x24] sm:$0xf]
    %v41 = vld [vmem:[#allocation2 + $0x28] sm:$0xf]
    %v42 = vld [vmem:[#allocation2 + $0x2c] sm:$0xf]
    %v43 = vld [vmem:[#allocation2 + $0x30] sm:$0xf]
    %v44 = vld [vmem:[#allocation2 + $0x34] sm:$0xf]
    %v45 = vld [vmem:[#allocation2 + $0x38] sm:$0xf]
    %v46 = vld [vmem:[#allocation2 + $0x3c] sm:$0xf]
    %v47 = vld [vmem:[#allocation2 + $0x40] sm:$0xf]
    %v48 = vld [vmem:[#allocation2 + $0x44] sm:$0xf]
    %v49 = vld [vmem:[#allocation2 + $0x48] sm:$0xf]
    %v50 = vld [vmem:[#allocation2 + $0x4c] sm:$0xf]
    %v51 = vld [vmem:[#allocation2 + $0x50] sm:$0xf]
    %v52 = vld [vmem:[#allocation2 + $0x54] sm:$0xf]
    %v53 = vld [vmem:[#allocation2 + $0x58] sm:$0xf]
    %v54 = vld [vmem:[#allocation2 + $0x5c] sm:$0xf]
    %v55 = vld [vmem:[#allocation2 + $0x60] sm:$0xf]
    %v56 = vld [vmem:[#allocation2 + $0x64] sm:$0xf]
    %v57 = vld [vmem:[#allocation2 + $0x68] sm:$0xf]
    %v58 = vld [vmem:[#allocation2 + $0x6c] sm:$0xf]
    %v59 = vld [vmem:[#allocation2 + $0x70] sm:$0xf]
    %v60 = vld [vmem:[#allocation2 + $0x74] sm:$0xf]
    %v61 = vld [vmem:[#allocation2 + $0x78] sm:$0xf]
    %v62 = vld [vmem:[#allocation2 + $0x7c] sm:$0xf]
    %v63 = vld [vmem:[%s2] sm:$0x1]
    %v65 = vlaneseq
    %v66 = vshrl.u32 %v65, 7
    %v67 = vsub.s32 0, %v66
    %v68 = vrot.slane %v63, %v67
    %v72 = vunpack.c.l.b16 %v29
    %v73 = vunpack.c.h.b16 %v29
    %v74 = vunpack.c.l.b16 %v30
    %v75 = vunpack.c.h.b16 %v30
    %v76 = vpack.c.b16 %v74, %v72
    %v77 = vpack.c.b16 %v75, %v73
    %v112 = vunpack.c.l.b16 %v31
    %v113 = vunpack.c.l.b16 %v32
    %v114 = vunpack.c.l.b16 %v33
    %v115 = vunpack.c.l.b16 %v34
    %v116 = vunpack.c.l.b16 %v35
    %v117 = vunpack.c.l.b16 %v36
    %v118 = vunpack.c.l.b16 %v37
    %v119 = vunpack.c.l.b16 %v38
    %v120 = vunpack.c.l.b16 %v39
    %v121 = vunpack.c.l.b16 %v40
    %v122 = vunpack.c.l.b16 %v41
    %v123 = vunpack.c.l.b16 %v42
    %v124 = vunpack.c.l.b16 %v43
    %v125 = vunpack.c.l.b16 %v44
    %v126 = vunpack.c.l.b16 %v45
    %v127 = vunpack.c.l.b16 %v46
    %v128 = vunpack.c.l.b16 %v47
    %v129 = vunpack.c.l.b16 %v48
    %v130 = vunpack.c.l.b16 %v49
    %v131 = vunpack.c.l.b16 %v50
    %v132 = vunpack.c.l.b16 %v51
    %v133 = vunpack.c.l.b16 %v52
    %v134 = vunpack.c.l.b16 %v53
    %v135 = vunpack.c.l.b16 %v54
    %v136 = vunpack.c.l.b16 %v55
    %v137 = vunpack.c.l.b16 %v56
    %v138 = vunpack.c.l.b16 %v57
    %v139 = vunpack.c.l.b16 %v58
    %v140 = vunpack.c.l.b16 %v59
    %v141 = vunpack.c.l.b16 %v60
    %v142 = vunpack.c.l.b16 %v61
    %v143 = vunpack.c.l.b16 %v62
    %v144 = vpack.c.b16 %v113, %v112
    %v145 = vpack.c.b16 %v115, %v114
    %v146 = vpack.c.b16 %v117, %v116
    %v147 = vpack.c.b16 %v119, %v118
    %v148 = vpack.c.b16 %v121, %v120
    %v149 = vpack.c.b16 %v123, %v122
    %v150 = vpack.c.b16 %v125, %v124
    %v151 = vpack.c.b16 %v127, %v126
    %v152 = vpack.c.b16 %v129, %v128
    %v153 = vpack.c.b16 %v131, %v130
    %v154 = vpack.c.b16 %v133, %v132
    %v155 = vpack.c.b16 %v135, %v134
    %v156 = vpack.c.b16 %v137, %v136
    %v157 = vpack.c.b16 %v139, %v138
    %v158 = vpack.c.b16 %v141, %v140
    %v159 = vpack.c.b16 %v143, %v142
    %176 = vmatprep.subr.bf16.mxu0 0
    %177 = vmatpush1.bf16.msra.mxu0 %v144
    %178 = vmatprep.subr.bf16.mxu0 0
    %179 = vmatpush1.bf16.msra.mxu0 %v145
    %180 = vmatprep.subr.bf16.mxu0 0
    %181 = vmatpush1.bf16.msra.mxu0 %v146
    %182 = vmatprep.subr.bf16.mxu0 0
    %183 = vmatpush1.bf16.msra.mxu0 %v147
    %184 = vmatprep.subr.bf16.mxu0 0
    %185 = vmatpush1.bf16.msra.mxu0 %v148
    %186 = vmatprep.subr.bf16.mxu0 0
    %187 = vmatpush1.bf16.msra.mxu0 %v149
    %188 = vmatprep.subr.bf16.mxu0 0
    %189 = vmatpush1.bf16.msra.mxu0 %v150
    %190 = vmatprep.subr.bf16.mxu0 0
    %191 = vmatpush1.bf16.msra.mxu0 %v151
    %192 = vmatprep.subr.bf16.mxu0 0
    %193 = vmatpush1.bf16.msra.mxu0 %v152
    %194 = vmatprep.subr.bf16.mxu0 0
    %195 = vmatpush1.bf16.msra.mxu0 %v153
    %196 = vmatprep.subr.bf16.mxu0 0
    %197 = vmatpush1.bf16.msra.mxu0 %v154
    %198 = vmatprep.subr.bf16.mxu0 0
    %199 = vmatpush1.bf16.msra.mxu0 %v155
    %200 = vmatprep.subr.bf16.mxu0 0
    %201 = vmatpush1.bf16.msra.mxu0 %v156
    %202 = vmatprep.subr.bf16.mxu0 0
    %203 = vmatpush1.bf16.msra.mxu0 %v157
    %204 = vmatprep.subr.bf16.mxu0 0
    %205 = vmatpush1.bf16.msra.mxu0 %v158
    %206 = vmatprep.subr.bf16.mxu0 0
    %207 = vmatpush1.bf16.msra.mxu0 %v159
    %208 = vmatprep.mubr.bf16.mxu0 %v77
    %209 = vmatmul.mubr.bf16.gmra.mrb[0].mxu0 %v76
    %v210 = vpop.f32.mrb[0].mxu0
    %v211 = vadd.f32 %v68, %v210
    %v212 = vpop.f32.mrb[0].mxu0
    %v213 = vpop.f32.mrb[0].mxu0
    %v214 = vadd.f32 %v68, %v213
    %v215 = vpop.f32.mrb[0].mxu0
    %216 = vdwg.mxu0
    %217 = vst [vmem:[%s3] sm:$0xff] %v211
    %218 = vst [vmem:[%s3 + $0x8] sm:$0xff] %v214
    // Predicated region
    $region18: #{fashion_mnist_model_v0_forward.1} parent=1 // pred_check
      _
    $region19: #{fashion_mnist_model_v0_forward.1} parent=1 // pred_check_branch
      %220 = sbr.rel (0) target = $region21
    $region20: #{fashion_mnist_model_v0_forward.1} parent=1 // pred_region
      _
    $region21: #{fashion_mnist_model_v0_forward.1} parent=1 // pred_fallthru
      _
    // Predicated region
    $region22: #{fashion_mnist_model_v0_forward.1} parent=1 // pred_check
      _
    $region23: #{fashion_mnist_model_v0_forward.1} parent=1 // pred_check_branch
      %222 = sbr.rel (0) target = $region25
    $region24: #{fashion_mnist_model_v0_forward.1} parent=1 // pred_region
      _
    $region25: #{fashion_mnist_model_v0_forward.1} parent=1 // pred_fallthru
      _
    %223 = vsyncpa [#allocation3], 1

</llo_original>
